<compile_context>
chip_gen: v7x
topology: tpu7x:2x2x1
jax: 0.10.0
libtpu: 0.0.40
codegen_flags: <defaults>
</compile_context>

<pallas_src>
import functools
from dataclasses import dataclass

import jax
import jax.numpy as jnp
from jax import lax
from jax.experimental import pallas as pl
from jax.experimental.pallas import tpu as pltpu

P = 128  # every padded feature dimension (TPU lane width)


def _r8(n):
    return ((n + 7) // 8) * 8


@dataclass(frozen=True)
class VAE2Config:
    encoder_layer_sizes: tuple   # first entry = raw x dim (before label/domain concat)
    latent_size: int
    decoder_layer_sizes: tuple   # last entry = reconstruction dim
    conditional: bool
    num_labels: int
    num_domains: int


def _dims(cfg):
    nl = cfg.num_labels if cfg.conditional else 0
    nd = cfg.num_domains
    x_dim = cfg.encoder_layer_sizes[0]
    return dict(
        x_dim=x_dim,
        latent=cfg.latent_size,
        nl=nl,
        nd=nd,
        nlp=_r8(nl) if nl > 0 else 0,
        ndp=_r8(nd) if nd > 0 else 0,
        xp=_r8(x_dim),
        zp=_r8(cfg.latent_size),
        n_enc=len(cfg.encoder_layer_sizes) - 1,   # encoder hidden linears
        n_dec=len(cfg.decoder_layer_sizes),       # decoder linears
        dec_out=cfg.decoder_layer_sizes[-1],
    )


# ----------------------------------------------------------------------------- kernel
def _make_vae2_kernel(cfg):
    dm = _dims(cfg)
    latent = dm["latent"]
    nl, nd, nlp, ndp = dm["nl"], dm["nd"], dm["nlp"], dm["ndp"]
    xp, zp = dm["xp"], dm["zp"]
    n_enc, n_dec, dec_out = dm["n_enc"], dm["n_dec"], dm["dec_out"]
    f32, bf16 = jnp.float32, jnp.bfloat16

    def mm(a, w):  # bf16 MXU operands, f32 accumulation
        return jnp.dot(a.astype(bf16), w, preferred_element_type=f32)

    def kernel(x_ref, c_ref, d_ref, eps_ref,
               enc_w_ref, enc_b_ref, dec_w_ref, dec_b_ref,
               *out_refs):
        if cfg.conditional:
            mlv_ref, z_ref, rx_ref = out_refs
            rx2_ref = None
        else:
            mlv_ref, z_ref, rx_ref, rx2_ref = out_refs

        B = x_ref.shape[0]
        colP = lax.broadcasted_iota(jnp.int32, (B, P), 1)

        # --- encoder layer 0: fused [x | onehot(c) | onehot(d)] slab, ONE MXU push ---
        xc = x_ref[...]                                   # (B,128) f32, zero past x_dim
        if nl > 0:
            xc = xc + (colP == (c_ref[...] + xp)).astype(f32)
        if nd > 0:
            xc = xc + (colP == (d_ref[...] + xp + nlp)).astype(f32)
        h = jnp.maximum(mm(xc, enc_w_ref[0]) + enc_b_ref[0], 0.0)
        for li in range(1, n_enc):
            h = jnp.maximum(mm(h, enc_w_ref[li]) + enc_b_ref[li], 0.0)

        # --- fused means|log_var head: one MXU push, one lane-dense (B,128) store ---
        mlv = mm(h, enc_w_ref[n_enc]) + enc_b_ref[n_enc]  # [means | log_var | 0...]
        mlv_ref[...] = mlv

        # --- reparameterisation; log_var recovered with an XLU lane rotate (no extra matmul) ---
        logv = pltpu.roll(mlv, shift=P - latent, axis=1)  # lanes [0:latent) = log_var
        lat_mask = colP < latent
        z = jnp.where(lat_mask, eps_ref[...] * jnp.exp(0.5 * logv) + mlv, 0.0)
        z_ref[...] = z

        # --- decoder: fused conditioning lanes, single pass (or one stacked 2B pass) ---
        dw0 = dec_w_ref[0]

        def run_decoder(zfull):
            g = jnp.maximum(mm(zfull, dw0) + dec_b_ref[0], 0.0)
            for li in range(1, n_dec - 1):
                g = jnp.maximum(mm(g, dec_w_ref[li]) + dec_b_ref[li], 0.0)
            g = mm(g, dec_w_ref[n_dec - 1]) + dec_b_ref[n_dec - 1]
            g = pl.reciprocal(1.0 + jnp.exp(-g), approx=False)          # sigmoid (EUP recip)
            colg = lax.broadcasted_iota(jnp.int32, g.shape, 1)
            g = jnp.where(colg < dec_out, g, 0.0)                       # drop pad lanes pre-norm
            ss = jnp.sum(g * g, axis=1, keepdims=True)
            # F.normalize(p=2, dim=1): x / max(||x||, 1e-12)  ==  x * rsqrt(max(ss, 1e-24))
            return g * lax.rsqrt(jnp.maximum(ss, 1e-24))

        z_dec = z
        if nl > 0:
            z_dec = z_dec + (colP == (c_ref[...] + zp)).astype(f32)

        if cfg.conditional:
            # PyTorch VAE2 discards recon_x2 when conditional: skip the second pass.
            if nd > 0:
                z_dec = z_dec + (colP == (d_ref[...] + zp + nlp)).astype(f32)
            rx_ref[...] = run_decoder(z_dec)
        else:
            if nd > 0:
                d = d_ref[...]
                z_top = z_dec + (colP == (d + zp + nlp)).astype(f32)
                z_bot = z_dec + (colP == ((1 - d) + zp + nlp)).astype(f32)
                zz = jnp.concatenate([z_top, z_bot], axis=0)            # (2B, 128)
                gg = run_decoder(zz)                                    # both passes in one MLP run
                rx_ref[...] = gg[0:B]
                rx2_ref[...] = gg[B:2 * B]
            else:
                rx = run_decoder(z_dec)
                rx_ref[...] = rx
                rx2_ref[...] = rx

    return kernel


# --------------------------------------------------------------------- param handling
def init_vae2_params(key, cfg):
    """Logical (PyTorch-shaped) params: W stored as (in, out), b as (out,)."""
    def linear(k, fi, fo):
        kw, kb = jax.random.split(k)
        return (0.1 * jax.random.normal(kw, (fi, fo), jnp.float32),
                0.1 * jax.random.normal(kb, (fo,), jnp.float32))

    dm = _dims(cfg)
    extra = dm["nl"] + dm["nd"]
    enc_sizes = [cfg.encoder_layer_sizes[0] + extra] + list(cfg.encoder_layer_sizes[1:])
    dec_sizes = [cfg.latent_size + extra] + list(cfg.decoder_layer_sizes)

    keys = iter(jax.random.split(key, 64))
    params = {"enc_mlp": [], "dec_mlp": []}
    for fi, fo in zip(enc_sizes[:-1], enc_sizes[1:]):
        params["enc_mlp"].append(linear(next(keys), fi, fo))
    params["enc_means"] = linear(next(keys), enc_sizes[-1], cfg.latent_size)
    params["enc_log_var"] = linear(next(keys), enc_sizes[-1], cfg.latent_size)
    for fi, fo in zip(dec_sizes[:-1], dec_sizes[1:]):
        params["dec_mlp"].append(linear(next(keys), fi, fo))
    return params


def pack_vae2_params(params, cfg):
    """Pack everything into 4 padded, lane-dense buffers (host-side, one time).
    Weights are stored bf16 (MXU-native); biases stay f32."""
    dm = _dims(cfg)
    x_dim, latent = dm["x_dim"], dm["latent"]
    nl, nd, nlp, ndp = dm["nl"], dm["nd"], dm["nlp"], dm["ndp"]
    xp, zp = dm["xp"], dm["zp"]
    n_enc, n_dec = dm["n_enc"], dm["n_dec"]

    widths = list(cfg.encoder_layer_sizes[1:]) + [2 * latent] + list(cfg.decoder_layer_sizes)
    assert max(widths) <= P and xp + nlp + ndp <= P and zp + nlp + ndp <= P, \
        "layer widths must fit one 128-lane slab; use a K/N-tiled grid for larger layers"
    assert n_enc >= 1 and n_dec >= 2

    enc_w = jnp.zeros((n_enc + 1, P, P), jnp.float32)   # hidden layers + fused means|log_var head
    enc_b = jnp.zeros((n_enc + 1, 1, P), jnp.float32)
    dec_w = jnp.zeros((n_dec, P, P), jnp.float32)
    dec_b = jnp.zeros((n_dec, 1, P), jnp.float32)

    # encoder first layer: rows split into [x | onehot(c) | onehot(d)] sections
    W0, b0 = params["enc_mlp"][0]
    h1 = W0.shape[1]
    enc_w = enc_w.at[0, 0:x_dim, 0:h1].set(W0[0:x_dim])
    off = x_dim
    if nl > 0:
        enc_w = enc_w.at[0, xp:xp + nl, 0:h1].set(W0[off:off + nl]); off += nl
    if nd > 0:
        enc_w = enc_w.at[0, xp + nlp:xp + nlp + nd, 0:h1].set(W0[off:off + nd]); off += nd
    enc_b = enc_b.at[0, 0, 0:h1].set(b0)

    for i, (W, b) in enumerate(params["enc_mlp"][1:], start=1):
        enc_w = enc_w.at[i, 0:W.shape[0], 0:W.shape[1]].set(W)
        enc_b = enc_b.at[i, 0, 0:b.shape[0]].set(b)

    # fused means|log_var head (log_var is recovered in-kernel with an XLU roll)
    wm, bm = params["enc_means"]
    wv, bv = params["enc_log_var"]
    enc_w = enc_w.at[n_enc, 0:wm.shape[0], 0:latent].set(wm)
    enc_w = enc_w.at[n_enc, 0:wv.shape[0], latent:2 * latent].set(wv)
    enc_b = enc_b.at[n_enc, 0, 0:latent].set(bm)
    enc_b = enc_b.at[n_enc, 0, latent:2 * latent].set(bv)

    # decoder first layer: rows split into [z | onehot(c) | onehot(d)] sections
    V0, c0 = params["dec_mlp"][0]
    d1 = V0.shape[1]
    dec_w = dec_w.at[0, 0:latent, 0:d1].set(V0[0:latent])
    off = latent
    if nl > 0:
        dec_w = dec_w.at[0, zp:zp + nl, 0:d1].set(V0[off:off + nl]); off += nl
    if nd > 0:
        dec_w = dec_w.at[0, zp + nlp:zp + nlp + nd, 0:d1].set(V0[off:off + nd]); off += nd
    dec_b = dec_b.at[0, 0, 0:d1].set(c0)

    for i, (W, b) in enumerate(params["dec_mlp"][1:], start=1):
        dec_w = dec_w.at[i, 0:W.shape[0], 0:W.shape[1]].set(W)
        dec_b = dec_b.at[i, 0, 0:b.shape[0]].set(b)

    return {"enc_w": enc_w.astype(jnp.bfloat16), "enc_b": enc_b,
            "dec_w": dec_w.astype(jnp.bfloat16), "dec_b": dec_b}


# --------------------------------------------------------------------------- wrapper
def vae2_pallas(x, c, d, eps, packed, cfg):
    """Matches VAE2.forward: conditional -> (recon_x, means, log_var, z),
    otherwise -> (recon_x, recon_x2, means, log_var, z)."""
    dm = _dims(cfg)
    B, latent, dec_out, x_dim = x.shape[0], dm["latent"], dm["dec_out"], dm["x_dim"]

    x_p = jnp.zeros((B, P), jnp.float32).at[:, :x_dim].set(x.astype(jnp.float32))
    c_col = (c if c is not None else jnp.zeros((B,), jnp.int32)).astype(jnp.int32).reshape(B, 1)
    d_col = (d if d is not None else jnp.zeros((B,), jnp.int32)).astype(jnp.int32).reshape(B, 1)
    # TODO(synk): eps could be drawn in-kernel with pltpu.prng_seed/prng_random_bits; it is
    # passed in here so the forward stays checkable against a deterministic JAX reference.
    eps_p = jnp.zeros((B, P), jnp.float32).at[:, :latent].set(eps.astype(jnp.float32))

    kernel = _make_vae2_kernel(cfg)
    vmem = pl.BlockSpec(memory_space=pltpu.MemorySpace.VMEM)
    n_out = 3 if cfg.conditional else 4
    out_shape = tuple(jax.ShapeDtypeStruct((B, P), jnp.float32) for _ in range(n_out))

    outs = pl.pallas_call(
        kernel,
        out_shape=out_shape,
        in_specs=[vmem] * 8,
        out_specs=tuple(vmem for _ in range(n_out)),
    )(x_p, c_col, d_col, eps_p,
      packed["enc_w"], packed["enc_b"], packed["dec_w"], packed["dec_b"])

    mlv, z_p, rx_p = outs[0], outs[1], outs[2]
    means = mlv[:, :latent]
    log_var = mlv[:, latent:2 * latent]
    z = z_p[:, :latent]
    recon_x = rx_p[:, :dec_out]
    if cfg.conditional:
        return recon_x, means, log_var, z
    recon_x2 = outs[3][:, :dec_out]
    return recon_x, recon_x2, means, log_var, z


# ------------------------------------------------------------------- plain-JAX reference
def vae2_reference(x, c, d, eps, params, cfg):
    """Mirrors the kernel's numerics (bf16 MXU operands, f32 accumulation) so the
    check stays tight; structurally identical to the PyTorch module."""
    dm = _dims(cfg)
    nl, nd = dm["nl"], dm["nd"]
    f32, bf16 = jnp.float32, jnp.bfloat16

    def mm(a, W, b):
        return jnp.dot(a.astype(bf16), W.astype(bf16), preferred_element_type=f32) + b

    x = x.astype(f32)

    def with_cond(t, dom):
        if nl > 0:
            t = jnp.concatenate([t, jax.nn.one_hot(c, nl, dtype=f32)], axis=-1)
        if nd > 0:
            t = jnp.concatenate([t, jax.nn.one_hot(dom, nd, dtype=f32)], axis=-1)
        return t

    h = with_cond(x, d)
    for W, b in params["enc_mlp"]:
        h = jnp.maximum(mm(h, W, b), 0.0)
    wm, bm = params["enc_means"]
    wv, bv = params["enc_log_var"]
    means, log_var = mm(h, wm, bm), mm(h, wv, bv)
    z = eps * jnp.exp(0.5 * log_var) + means

    def dec(dom):
        g = with_cond(z, dom)
        n = len(params["dec_mlp"])
        for i, (W, b) in enumerate(params["dec_mlp"]):
            g = mm(g, W, b)
            g = jnp.maximum(g, 0.0) if i + 1 < n else jax.nn.sigmoid(g)
        return g / jnp.maximum(jnp.sqrt(jnp.sum(g * g, axis=1, keepdims=True)), 1e-12)

    recon_x = dec(d)
    if cfg.conditional:
        return recon_x, means, log_var, z
    recon_x2 = dec(1 - d) if nd > 0 else recon_x
    return recon_x, recon_x2, means, log_var, z


# ------------------------------------------------------------------------------- main
if __name__ == "__main__":
    batch = 8
    for conditional in (True, False):
        cfg = VAE2Config(
            encoder_layer_sizes=(32, 64, 48),
            latent_size=16,
            decoder_layer_sizes=(48, 64, 32),
            conditional=conditional,
            num_labels=4,
            num_domains=2,   # binary domains so the module's `1 - d` flip is well defined
        )

        key = jax.random.PRNGKey(0)
        kx, kc, kd, ke, kp = jax.random.split(key, 5)
        x = jax.random.normal(kx, (batch, cfg.encoder_layer_sizes[0]), jnp.float32)
        c = jax.random.randint(kc, (batch,), 0, cfg.num_labels)
        d = jax.random.randint(kd, (batch,), 0, cfg.num_domains)
        eps = jax.random.normal(ke, (batch, cfg.latent_size), jnp.float32)

        params = init_vae2_params(kp, cfg)
        packed = pack_vae2_params(params, cfg)

        fwd = jax.jit(functools.partial(vae2_pallas, cfg=cfg))
        outs = fwd(x, c, d, eps, packed)
        jax.block_until_ready(outs)

        refs = vae2_reference(x, c, d, eps, params, cfg)
        names = ("recon_x", "means", "log_var", "z") if conditional else \
                ("recon_x", "recon_x2", "means", "log_var", "z")
        for name, got, want in zip(names, outs, refs):
            assert got.shape == want.shape, f"{name}: shape {got.shape} != {want.shape}"
            err = float(jnp.max(jnp.abs(got - want)))
            assert err < 1e-3, f"[conditional={conditional}] {name} mismatch, max |err|={err}"

    print("KERNEL_OK")
</pallas_src>

<mosaic_0001>
module attributes {stable_mosaic.version = 11 : i64} {
  func.func @kernel(%arg0: memref<8x128xf32, #tpu.memory_space<vmem>>, %arg1: memref<8x1xi32, #tpu.memory_space<vmem>>, %arg2: memref<8x1xi32, #tpu.memory_space<vmem>>, %arg3: memref<8x128xf32, #tpu.memory_space<vmem>>, %arg4: memref<3x128x128xbf16, #tpu.memory_space<vmem>>, %arg5: memref<3x1x128xf32, #tpu.memory_space<vmem>>, %arg6: memref<3x128x128xbf16, #tpu.memory_space<vmem>>, %arg7: memref<3x1x128xf32, #tpu.memory_space<vmem>>, %arg8: memref<8x128xf32, #tpu.memory_space<vmem>>, %arg9: memref<8x128xf32, #tpu.memory_space<vmem>>, %arg10: memref<8x128xf32, #tpu.memory_space<vmem>>) attributes {dimension_semantics = [], scalar_prefetch = 0 : i64, scratch_operands = 0 : i64, tpu.core_type = #tpu.core_type<tc>} {
    %0 = tpu.iota {dimensions = array<i32: 1>} : vector<8x128xi32>
    %c0 = arith.constant 0 : index
    %c0_0 = arith.constant 0 : index
    %1 = vector.load %arg0[%c0, %c0_0] : memref<8x128xf32, #tpu.memory_space<vmem>>, vector<8x128xf32>
    %c0_1 = arith.constant 0 : index
    %c0_2 = arith.constant 0 : index
    %2 = vector.load %arg1[%c0_1, %c0_2] : memref<8x1xi32, #tpu.memory_space<vmem>>, vector<8x1xi32>
    %c32_i32 = arith.constant 32 : i32
    %3 = vector.broadcast %c32_i32 : i32 to vector<8x1xi32>
    %4 = arith.addi %2, %3 : vector<8x1xi32>
    %5 = vector.broadcast %4 : vector<8x1xi32> to vector<8x128xi32>
    %6 = arith.cmpi eq, %0, %5 : vector<8x128xi32>
    %7 = arith.extui %6 : vector<8x128xi1> to vector<8x128xi32>
    %8 = arith.sitofp %7 : vector<8x128xi32> to vector<8x128xf32>
    %9 = arith.addf %1, %8 : vector<8x128xf32>
    %c0_3 = arith.constant 0 : index
    %c0_4 = arith.constant 0 : index
    %10 = vector.load %arg2[%c0_3, %c0_4] : memref<8x1xi32, #tpu.memory_space<vmem>>, vector<8x1xi32>
    %c32_i32_5 = arith.constant 32 : i32
    %11 = vector.broadcast %c32_i32_5 : i32 to vector<8x1xi32>
    %12 = arith.addi %10, %11 : vector<8x1xi32>
    %c8_i32 = arith.constant 8 : i32
    %13 = vector.broadcast %c8_i32 : i32 to vector<8x1xi32>
    %14 = arith.addi %12, %13 : vector<8x1xi32>
    %15 = vector.broadcast %14 : vector<8x1xi32> to vector<8x128xi32>
    %16 = arith.cmpi eq, %0, %15 : vector<8x128xi32>
    %17 = arith.extui %16 : vector<8x128xi1> to vector<8x128xi32>
    %18 = arith.sitofp %17 : vector<8x128xi32> to vector<8x128xf32>
    %19 = arith.addf %9, %18 : vector<8x128xf32>
    %c0_6 = arith.constant 0 : index
    %c0_7 = arith.constant 0 : index
    %c0_8 = arith.constant 0 : index
    %20 = vector.load %arg4[%c0_6, %c0_7, %c0_8] : memref<3x128x128xbf16, #tpu.memory_space<vmem>>, vector<1x128x128xbf16>
    %21 = vector.shape_cast %20 : vector<1x128x128xbf16> to vector<128x128xbf16>
    %22 = arith.truncf %19 : vector<8x128xf32> to vector<8x128xbf16>
    %cst = arith.constant dense<0.000000e+00> : vector<8x128xf32>
    %23 = tpu.matmul %22, %21, %cst {dimension_numbers = #tpu.dot_dimension_numbers<[1], [0], [0], [1], [0, 0, 1, 1], [], []>} : vector<8x128xbf16>, vector<128x128xbf16>, vector<8x128xf32> -> vector<8x128xf32>
    %c0_9 = arith.constant 0 : index
    %c0_10 = arith.constant 0 : index
    %c0_11 = arith.constant 0 : index
    %24 = vector.load %arg5[%c0_9, %c0_10, %c0_11] : memref<3x1x128xf32, #tpu.memory_space<vmem>>, vector<1x1x128xf32>
    %25 = vector.shape_cast %24 : vector<1x1x128xf32> to vector<1x128xf32>
    %26 = vector.broadcast %25 : vector<1x128xf32> to vector<8x128xf32>
    %27 = arith.addf %23, %26 : vector<8x128xf32>
    %cst_12 = arith.constant 0.000000e+00 : f32
    %28 = vector.broadcast %cst_12 : f32 to vector<8x128xf32>
    %29 = arith.maximumf %27, %28 : vector<8x128xf32>
    %c1 = arith.constant 1 : index
    %c0_13 = arith.constant 0 : index
    %c0_14 = arith.constant 0 : index
    %30 = vector.load %arg4[%c1, %c0_13, %c0_14] : memref<3x128x128xbf16, #tpu.memory_space<vmem>>, vector<1x128x128xbf16>
    %31 = vector.shape_cast %30 : vector<1x128x128xbf16> to vector<128x128xbf16>
    %32 = arith.truncf %29 : vector<8x128xf32> to vector<8x128xbf16>
    %cst_15 = arith.constant dense<0.000000e+00> : vector<8x128xf32>
    %33 = tpu.matmul %32, %31, %cst_15 {dimension_numbers = #tpu.dot_dimension_numbers<[1], [0], [0], [1], [0, 0, 1, 1], [], []>} : vector<8x128xbf16>, vector<128x128xbf16>, vector<8x128xf32> -> vector<8x128xf32>
    %c1_16 = arith.constant 1 : index
    %c0_17 = arith.constant 0 : index
    %c0_18 = arith.constant 0 : index
    %34 = vector.load %arg5[%c1_16, %c0_17, %c0_18] : memref<3x1x128xf32, #tpu.memory_space<vmem>>, vector<1x1x128xf32>
    %35 = vector.shape_cast %34 : vector<1x1x128xf32> to vector<1x128xf32>
    %36 = vector.broadcast %35 : vector<1x128xf32> to vector<8x128xf32>
    %37 = arith.addf %33, %36 : vector<8x128xf32>
    %cst_19 = arith.constant 0.000000e+00 : f32
    %38 = vector.broadcast %cst_19 : f32 to vector<8x128xf32>
    %39 = arith.maximumf %37, %38 : vector<8x128xf32>
    %c2 = arith.constant 2 : index
    %c0_20 = arith.constant 0 : index
    %c0_21 = arith.constant 0 : index
    %40 = vector.load %arg4[%c2, %c0_20, %c0_21] : memref<3x128x128xbf16, #tpu.memory_space<vmem>>, vector<1x128x128xbf16>
    %41 = vector.shape_cast %40 : vector<1x128x128xbf16> to vector<128x128xbf16>
    %42 = arith.truncf %39 : vector<8x128xf32> to vector<8x128xbf16>
    %cst_22 = arith.constant dense<0.000000e+00> : vector<8x128xf32>
    %43 = tpu.matmul %42, %41, %cst_22 {dimension_numbers = #tpu.dot_dimension_numbers<[1], [0], [0], [1], [0, 0, 1, 1], [], []>} : vector<8x128xbf16>, vector<128x128xbf16>, vector<8x128xf32> -> vector<8x128xf32>
    %c2_23 = arith.constant 2 : index
    %c0_24 = arith.constant 0 : index
    %c0_25 = arith.constant 0 : index
    %44 = vector.load %arg5[%c2_23, %c0_24, %c0_25] : memref<3x1x128xf32, #tpu.memory_space<vmem>>, vector<1x1x128xf32>
    %45 = vector.shape_cast %44 : vector<1x1x128xf32> to vector<1x128xf32>
    %46 = vector.broadcast %45 : vector<1x128xf32> to vector<8x128xf32>
    %47 = arith.addf %43, %46 : vector<8x128xf32>
    %c0_26 = arith.constant 0 : index
    %c0_27 = arith.constant 0 : index
    %48 = vector.load %arg8[%c0_26, %c0_27] : memref<8x128xf32, #tpu.memory_space<vmem>>, vector<8x128xf32>
    tpu.vector_store %arg8[%c0_26, %c0_27], %47 {strides = array<i32>} : memref<8x128xf32, #tpu.memory_space<vmem>>, vector<8x128xf32>,
    %c112_i32 = arith.constant 112 : i32
    %49 = tpu.dynamic_rotate %47 by %c112_i32 dim 1 : vector<8x128xf32>, i32 -> vector<8x128xf32>
    %c16_i32 = arith.constant 16 : i32
    %50 = vector.broadcast %c16_i32 : i32 to vector<8x128xi32>
    %51 = arith.cmpi slt, %0, %50 : vector<8x128xi32>
    %c0_28 = arith.constant 0 : index
    %c0_29 = arith.constant 0 : index
    %52 = vector.load %arg3[%c0_28, %c0_29] : memref<8x128xf32, #tpu.memory_space<vmem>>, vector<8x128xf32>
    %cst_30 = arith.constant 5.000000e-01 : f32
    %53 = vector.broadcast %cst_30 : f32 to vector<8x128xf32>
    %54 = arith.mulf %53, %49 : vector<8x128xf32>
    %55 = math.exp %54 : vector<8x128xf32>
    %56 = arith.mulf %52, %55 : vector<8x128xf32>
    %57 = arith.addf %56, %47 : vector<8x128xf32>
    %cst_31 = arith.constant 0.000000e+00 : f32
    %58 = vector.broadcast %cst_31 : f32 to vector<8x128xf32>
    %59 = arith.select %51, %57, %58 : vector<8x128xi1>, vector<8x128xf32>
    %c0_32 = arith.constant 0 : index
    %c0_33 = arith.constant 0 : index
    %60 = vector.load %arg9[%c0_32, %c0_33] : memref<8x128xf32, #tpu.memory_space<vmem>>, vector<8x128xf32>
    tpu.vector_store %arg9[%c0_32, %c0_33], %59 {strides = array<i32>} : memref<8x128xf32, #tpu.memory_space<vmem>>, vector<8x128xf32>,
    %c0_34 = arith.constant 0 : index
    %c0_35 = arith.constant 0 : index
    %c0_36 = arith.constant 0 : index
    %61 = vector.load %arg6[%c0_34, %c0_35, %c0_36] : memref<3x128x128xbf16, #tpu.memory_space<vmem>>, vector<1x128x128xbf16>
    %62 = vector.shape_cast %61 : vector<1x128x128xbf16> to vector<128x128xbf16>
    %c0_37 = arith.constant 0 : index
    %c0_38 = arith.constant 0 : index
    %63 = vector.load %arg1[%c0_37, %c0_38] : memref<8x1xi32, #tpu.memory_space<vmem>>, vector<8x1xi32>
    %c16_i32_39 = arith.constant 16 : i32
    %64 = vector.broadcast %c16_i32_39 : i32 to vector<8x1xi32>
    %65 = arith.addi %63, %64 : vector<8x1xi32>
    %66 = vector.broadcast %65 : vector<8x1xi32> to vector<8x128xi32>
    %67 = arith.cmpi eq, %0, %66 : vector<8x128xi32>
    %68 = arith.extui %67 : vector<8x128xi1> to vector<8x128xi32>
    %69 = arith.sitofp %68 : vector<8x128xi32> to vector<8x128xf32>
    %70 = arith.addf %59, %69 : vector<8x128xf32>
    %c0_40 = arith.constant 0 : index
    %c0_41 = arith.constant 0 : index
    %71 = vector.load %arg2[%c0_40, %c0_41] : memref<8x1xi32, #tpu.memory_space<vmem>>, vector<8x1xi32>
    %c16_i32_42 = arith.constant 16 : i32
    %72 = vector.broadcast %c16_i32_42 : i32 to vector<8x1xi32>
    %73 = arith.addi %71, %72 : vector<8x1xi32>
    %c8_i32_43 = arith.constant 8 : i32
    %74 = vector.broadcast %c8_i32_43 : i32 to vector<8x1xi32>
    %75 = arith.addi %73, %74 : vector<8x1xi32>
    %76 = vector.broadcast %75 : vector<8x1xi32> to vector<8x128xi32>
    %77 = arith.cmpi eq, %0, %76 : vector<8x128xi32>
    %78 = arith.extui %77 : vector<8x128xi1> to vector<8x128xi32>
    %79 = arith.sitofp %78 : vector<8x128xi32> to vector<8x128xf32>
    %80 = arith.addf %70, %79 : vector<8x128xf32>
    %81 = arith.truncf %80 : vector<8x128xf32> to vector<8x128xbf16>
    %cst_44 = arith.constant dense<0.000000e+00> : vector<8x128xf32>
    %82 = tpu.matmul %81, %62, %cst_44 {dimension_numbers = #tpu.dot_dimension_numbers<[1], [0], [0], [1], [0, 0, 1, 1], [], []>} : vector<8x128xbf16>, vector<128x128xbf16>, vector<8x128xf32> -> vector<8x128xf32>
    %c0_45 = arith.constant 0 : index
    %c0_46 = arith.constant 0 : index
    %c0_47 = arith.constant 0 : index
    %83 = vector.load %arg7[%c0_45, %c0_46, %c0_47] : memref<3x1x128xf32, #tpu.memory_space<vmem>>, vector<1x1x128xf32>
    %84 = vector.shape_cast %83 : vector<1x1x128xf32> to vector<1x128xf32>
    %85 = vector.broadcast %84 : vector<1x128xf32> to vector<8x128xf32>
    %86 = arith.addf %82, %85 : vector<8x128xf32>
    %cst_48 = arith.constant 0.000000e+00 : f32
    %87 = vector.broadcast %cst_48 : f32 to vector<8x128xf32>
    %88 = arith.maximumf %86, %87 : vector<8x128xf32>
    %c1_49 = arith.constant 1 : index
    %c0_50 = arith.constant 0 : index
    %c0_51 = arith.constant 0 : index
    %89 = vector.load %arg6[%c1_49, %c0_50, %c0_51] : memref<3x128x128xbf16, #tpu.memory_space<vmem>>, vector<1x128x128xbf16>
    %90 = vector.shape_cast %89 : vector<1x128x128xbf16> to vector<128x128xbf16>
    %91 = arith.truncf %88 : vector<8x128xf32> to vector<8x128xbf16>
    %cst_52 = arith.constant dense<0.000000e+00> : vector<8x128xf32>
    %92 = tpu.matmul %91, %90, %cst_52 {dimension_numbers = #tpu.dot_dimension_numbers<[1], [0], [0], [1], [0, 0, 1, 1], [], []>} : vector<8x128xbf16>, vector<128x128xbf16>, vector<8x128xf32> -> vector<8x128xf32>
    %c1_53 = arith.constant 1 : index
    %c0_54 = arith.constant 0 : index
    %c0_55 = arith.constant 0 : index
    %93 = vector.load %arg7[%c1_53, %c0_54, %c0_55] : memref<3x1x128xf32, #tpu.memory_space<vmem>>, vector<1x1x128xf32>
    %94 = vector.shape_cast %93 : vector<1x1x128xf32> to vector<1x128xf32>
    %95 = vector.broadcast %94 : vector<1x128xf32> to vector<8x128xf32>
    %96 = arith.addf %92, %95 : vector<8x128xf32>
    %cst_56 = arith.constant 0.000000e+00 : f32
    %97 = vector.broadcast %cst_56 : f32 to vector<8x128xf32>
    %98 = arith.maximumf %96, %97 : vector<8x128xf32>
    %c2_57 = arith.constant 2 : index
    %c0_58 = arith.constant 0 : index
    %c0_59 = arith.constant 0 : index
    %99 = vector.load %arg6[%c2_57, %c0_58, %c0_59] : memref<3x128x128xbf16, #tpu.memory_space<vmem>>, vector<1x128x128xbf16>
    %100 = vector.shape_cast %99 : vector<1x128x128xbf16> to vector<128x128xbf16>
    %101 = arith.truncf %98 : vector<8x128xf32> to vector<8x128xbf16>
    %cst_60 = arith.constant dense<0.000000e+00> : vector<8x128xf32>
    %102 = tpu.matmul %101, %100, %cst_60 {dimension_numbers = #tpu.dot_dimension_numbers<[1], [0], [0], [1], [0, 0, 1, 1], [], []>} : vector<8x128xbf16>, vector<128x128xbf16>, vector<8x128xf32> -> vector<8x128xf32>
    %c2_61 = arith.constant 2 : index
    %c0_62 = arith.constant 0 : index
    %c0_63 = arith.constant 0 : index
    %103 = vector.load %arg7[%c2_61, %c0_62, %c0_63] : memref<3x1x128xf32, #tpu.memory_space<vmem>>, vector<1x1x128xf32>
    %104 = vector.shape_cast %103 : vector<1x1x128xf32> to vector<1x128xf32>
    %105 = vector.broadcast %104 : vector<1x128xf32> to vector<8x128xf32>
    %106 = arith.addf %102, %105 : vector<8x128xf32>
    %cst_64 = arith.constant 0.000000e+00 : f32
    %107 = vector.broadcast %cst_64 : f32 to vector<8x128xf32>
    %108 = arith.subf %107, %106 : vector<8x128xf32>
    %109 = math.exp %108 : vector<8x128xf32>
    %cst_65 = arith.constant 1.000000e+00 : f32
    %110 = vector.broadcast %cst_65 : f32 to vector<8x128xf32>
    %111 = arith.addf %110, %109 : vector<8x128xf32>
    %112 = tpu.reciprocal %111 : vector<8x128xf32> -> vector<8x128xf32>
    %113 = tpu.iota {dimensions = array<i32: 1>} : vector<8x128xi32>
    %c32_i32_66 = arith.constant 32 : i32
    %114 = vector.broadcast %c32_i32_66 : i32 to vector<8x128xi32>
    %115 = arith.cmpi slt, %113, %114 : vector<8x128xi32>
    %cst_67 = arith.constant 0.000000e+00 : f32
    %116 = vector.broadcast %cst_67 : f32 to vector<8x128xf32>
    %117 = arith.select %115, %112, %116 : vector<8x128xi1>, vector<8x128xf32>
    %118 = arith.mulf %117, %117 : vector<8x128xf32>
    %cst_68 = arith.constant dense<0.000000e+00> : vector<8xf32>
    %119 = vector.multi_reduction <add>, %118, %cst_68 [1] : vector<8x128xf32> to vector<8xf32>
    %120 = vector.shape_cast %119 : vector<8xf32> to vector<8x1xf32>
    %cst_69 = arith.constant 1.000000e-24 : f32
    %121 = vector.broadcast %cst_69 : f32 to vector<8x1xf32>
    %122 = arith.maximumf %120, %121 : vector<8x1xf32>
    %123 = math.rsqrt %122 : vector<8x1xf32>
    %124 = vector.broadcast %123 : vector<8x1xf32> to vector<8x128xf32>
    %125 = arith.mulf %117, %124 : vector<8x128xf32>
    %c0_70 = arith.constant 0 : index
    %c0_71 = arith.constant 0 : index
    %126 = vector.load %arg10[%c0_70, %c0_71] : memref<8x128xf32, #tpu.memory_space<vmem>>, vector<8x128xf32>
    tpu.vector_store %arg10[%c0_70, %c0_71], %125 {strides = array<i32>} : memref<8x128xf32, #tpu.memory_space<vmem>>, vector<8x128xf32>,
    return
  }
}

</mosaic_0001>

<llo_original>
// kernel: vae2_pallas.1
$region0: #{vae2_pallas.1}
  #allocation0 [shape = 'u32[]', space=smem, size = 0x4, offset = 0x4, fixed_abs, tag = 'smem constant byte address 0x4 - core index']
  #allocation1 [shape = 'u32[144,128]{1,0:T(1,128)}', space=vmem, size = 0x12000, scoped, tag = 'internal scratch']
  %s0 = inlined_call_operand.vmem [shape: f32[8,128], index: 0, kind: input, shape index: {}]
  %s1 = inlined_call_operand.vmem [shape: s32[8,1], index: 1, kind: input, shape index: {}]
  %s2 = inlined_call_operand.vmem [shape: s32[8,1], index: 2, kind: input, shape index: {}]
  %s3 = inlined_call_operand.vmem [shape: f32[8,128], index: 3, kind: input, shape index: {}]
  %s4 = inlined_call_operand.hbm [shape: bf16[3,128,128], index: 4, kind: input, shape index: {}]
  %s5 = inlined_call_operand.vmem [shape: f32[3,1,128], index: 5, kind: input, shape index: {}]
  %s6 = inlined_call_operand.hbm [shape: bf16[3,128,128], index: 6, kind: input, shape index: {}]
  %s7 = inlined_call_operand.vmem [shape: f32[3,1,128], index: 7, kind: input, shape index: {}]
  %s8 = inlined_call_operand.vmem [shape: f32[8,128], index: 8, kind: output, shape index: {0}]
  %s9 = inlined_call_operand.hbm [shape: f32[8,128], index: 9, kind: output, shape index: {1}]
  %s10 = inlined_call_operand.hbm [shape: f32[8,128], index: 10, kind: output, shape index: {2}]
  %11 = xla_tuple %s8, %s9, %s10
  %s12 = sld [smem:[#allocation0]]
  $region66: #{vae2_pallas.1} parent=0
    _
  %s14 = ssub.s32 1, %s12
  %s15 = scalar_select 0, %s14, %s12
  $region1: #{vae2_pallas.1} parent=0
    #allocation2 [shape = 'u8[98304]{0}', space=vmem, size = 0x18000, scoped, tag = 'input window, operand 4, single buffered']
    #allocation3 [shape = 's32[1]{0}', space=sflag, size = 0x4, scoped, tag = 'scoped memory for vae2_pallas.1']
    #allocation4 [shape = 's32[1]{0}', space=sflag, size = 0x4, scoped, tag = 'scoped memory for vae2_pallas.1']
    #allocation5 [shape = 'u8[98304]{0}', space=vmem, size = 0x18000, scoped, tag = 'input window, operand 6, single buffered']
    #allocation6 [shape = 's32[1]{0}', space=sflag, size = 0x4, scoped, tag = 'scoped memory for vae2_pallas.1']
    #allocation7 [shape = 'u8[4096]{0}', space=vmem, size = 0x1000, scoped, tag = 'output window, operand 1, single buffered']
    #allocation8 [shape = 'u8[4096]{0}', space=vmem, size = 0x1000, scoped, tag = 'output window, operand 2, single buffered']
    #allocation9 [shape = 's32[1]{0}', space=sflag, size = 0x4, scoped, tag = 'scoped memory for vae2_pallas.1']
    %16 = vsyncpa [#allocation3], 0
    %17 = vsyncpa [#allocation6], 0
    %18 = vsyncpa [#allocation4], 0
    %19 = vsyncpa [#allocation9], 0
    // Predicated region
    $region2: #{vae2_pallas.1} parent=1 // pred_check
      _
    $region3: #{vae2_pallas.1} parent=1 // pred_check_branch
      %21 = sbr.rel (0) target = $region5
    $region4: #{vae2_pallas.1} parent=1 // pred_region
      _
    $region5: #{vae2_pallas.1} parent=1 // pred_fallthru
      _
    // Predicated region
    $region6: #{vae2_pallas.1} parent=1 // pred_check
      _
    $region7: #{vae2_pallas.1} parent=1 // pred_check_branch
      %23 = sbr.rel (0) target = $region9
    $region8: #{vae2_pallas.1} parent=1 // pred_region
      _
    $region9: #{vae2_pallas.1} parent=1 // pred_fallthru
      _
    // Predicated region
    $region10: #{vae2_pallas.1} parent=1 // pred_check
      _
    $region11: #{vae2_pallas.1} parent=1 // pred_check_branch
      %25 = sbr.rel (0) target = $region13
    $region12: #{vae2_pallas.1} parent=1 // pred_region
      _
    $region13: #{vae2_pallas.1} parent=1 // pred_fallthru
      _
    // Predicated region
    $region14: #{vae2_pallas.1} parent=1 // pred_check
      _
    $region15: #{vae2_pallas.1} parent=1 // pred_check_branch
      %27 = sbr.rel (0) target = $region17
    $region16: #{vae2_pallas.1} parent=1 // pred_region
      _
    $region17: #{vae2_pallas.1} parent=1 // pred_fallthru
      _
    // Predicated region
    $region18: #{vae2_pallas.1} parent=1 // pred_check
      _
    $region19: #{vae2_pallas.1} parent=1 // pred_check_branch
      %29 = sbr.rel (0) target = $region21
    $region20: #{vae2_pallas.1} parent=1 // pred_region
      %s31 = ssub.s32 3072, 3072
      %32 = vsyncadd [#allocation3], %s31
      %s33 = sshll.u32 [#allocation2], 4
      %s34 = int_to_ptr.vmem [resolvable:$true] %s33
      %39 = dma.hbm_to_vmem [thread:$0]  %s4, 3072, %s34, [#allocation3], 64, 64, 4
    $region21: #{vae2_pallas.1} parent=1 // pred_fallthru
      _
    // Predicated region
    $region22: #{vae2_pallas.1} parent=1 // pred_check
      _
    $region23: #{vae2_pallas.1} parent=1 // pred_check_branch
      %41 = sbr.rel (0) target = $region25
    $region24: #{vae2_pallas.1} parent=1 // pred_region
      _
    $region25: #{vae2_pallas.1} parent=1 // pred_fallthru
      _
    // Predicated region
    $region26: #{vae2_pallas.1} parent=1 // pred_check
      _
    $region27: #{vae2_pallas.1} parent=1 // pred_check_branch
      %43 = sbr.rel (0) target = $region29
    $region28: #{vae2_pallas.1} parent=1 // pred_region
      %s45 = ssub.s32 3072, 3072
      %46 = vsyncadd [#allocation6], %s45
      %s47 = sshll.u32 [#allocation5], 4
      %s48 = int_to_ptr.vmem [resolvable:$true] %s47
      %53 = dma.hbm_to_vmem [thread:$0]  %s6, 3072, %s48, [#allocation6], 64, 64, 4
    $region29: #{vae2_pallas.1} parent=1 // pred_fallthru
      _
    // Predicated region
    $region30: #{vae2_pallas.1} parent=1 // pred_check
      _
    $region31: #{vae2_pallas.1} parent=1 // pred_check_branch
      %55 = sbr.rel (0) target = $region33
    $region32: #{vae2_pallas.1} parent=1 // pred_region
      _
    $region33: #{vae2_pallas.1} parent=1 // pred_fallthru
      _
    // Predicated region
    $region34: #{vae2_pallas.1} parent=1 // pred_check
      _
    $region35: #{vae2_pallas.1} parent=1 // pred_check_branch
      %57 = sbr.rel (0) target = $region37
    $region36: #{vae2_pallas.1} parent=1 // pred_region
      %58 = dma.done [#allocation3], 3072
    $region37: #{vae2_pallas.1} parent=1 // pred_fallthru
      _
    // Predicated region
    $region38: #{vae2_pallas.1} parent=1 // pred_check
      _
    $region39: #{vae2_pallas.1} parent=1 // pred_check_branch
      %60 = sbr.rel (0) target = $region41
    $region40: #{vae2_pallas.1} parent=1 // pred_region
      %61 = dma.done [#allocation6], 3072
    $region41: #{vae2_pallas.1} parent=1 // pred_fallthru
      _
    %v63 = vlaneseq
    %v64 = vand.u32 %v63, 127
    %v65 = vld [vmem:[%s0] sm:$0xff]
    %v66 = vld [vmem:[%s1] sm:$0xff]
    %v67 = vadd.s32 %v66, 32
    %68 = vset.pattern.permute.xlu0 0
    %69 = vperm.xlu0 %68, %v67
    %v70 = vpop.permute.xlu0 %69
    %vm71 = vcmp.eq.s32.totalorder %v64, %v70
    %v72 = vsel %vm71, 1, 0
    %v73 = vcvt.s32.f32 %v72
    %v74 = vadd.f32 %v65, %v73
    %v75 = vld [vmem:[%s2] sm:$0xff]
    %v76 = vadd.s32 %v75, 32
    %v77 = vadd.s32 %v76, 8
    %78 = vset.pattern.permute.xlu0 0
    %79 = vperm.xlu0 %78, %v77
    %v80 = vpop.permute.xlu0 %79
    %vm81 = vcmp.eq.s32.totalorder %v64, %v80
    %v82 = vsel %vm81, 1, 0
    %v83 = vcvt.s32.f32 %v82
    %v84 = vadd.f32 %v74, %v83
    %v85 = vld [vmem:[#allocation2] sm:$0xf]
    %v86 = vld [vmem:[#allocation2 + $0x4] sm:$0xf]
    %v87 = vld [vmem:[#allocation2 + $0x8] sm:$0xf]
    %v88 = vld [vmem:[#allocation2 + $0xc] sm:$0xf]
    %v89 = vld [vmem:[#allocation2 + $0x10] sm:$0xf]
    %v90 = vld [vmem:[#allocation2 + $0x14] sm:$0xf]
    %v91 = vld [vmem:[#allocation2 + $0x18] sm:$0xf]
    %v92 = vld [vmem:[#allocation2 + $0x1c] sm:$0xf]
    %v93 = vld [vmem:[#allocation2 + $0x20] sm:$0xf]
    %v94 = vld [vmem:[#allocation2 + $0x24] sm:$0xf]
    %v95 = vld [vmem:[#allocation2 + $0x28] sm:$0xf]
    %v96 = vld [vmem:[#allocation2 + $0x2c] sm:$0xf]
    %v97 = vld [vmem:[#allocation2 + $0x30] sm:$0xf]
    %v98 = vld [vmem:[#allocation2 + $0x34] sm:$0xf]
    %v99 = vld [vmem:[#allocation2 + $0x38] sm:$0xf]
    %v100 = vld [vmem:[#allocation2 + $0x3c] sm:$0xf]
    %v101 = vpack.c.bf16 %v84, %v84
    %v102 = vld [vmem:[%s5] sm:$0x1]
    %v104 = vlaneseq
    %v105 = vshrl.u32 %v104, 7
    %v106 = vsub.s32 0, %v105
    %v107 = vrot.slane %v102, %v106
    %v125 = vunpack.c.l.b16 %v85
    %v126 = vunpack.c.l.b16 %v86
    %v127 = vunpack.c.l.b16 %v87
    %v128 = vunpack.c.l.b16 %v88
    %v129 = vunpack.c.l.b16 %v89
    %v130 = vunpack.c.l.b16 %v90
    %v131 = vunpack.c.l.b16 %v91
    %v132 = vunpack.c.l.b16 %v92
    %v133 = vunpack.c.l.b16 %v93
    %v134 = vunpack.c.l.b16 %v94
    %v135 = vunpack.c.l.b16 %v95
    %v136 = vunpack.c.l.b16 %v96
    %v137 = vunpack.c.l.b16 %v97
    %v138 = vunpack.c.l.b16 %v98
    %v139 = vunpack.c.l.b16 %v99
    %v140 = vunpack.c.l.b16 %v100
    %v141 = vpack.c.b16 %v126, %v125
    %v142 = vpack.c.b16 %v128, %v127
    %v143 = vpack.c.b16 %v130, %v129
    %v144 = vpack.c.b16 %v132, %v131
    %v145 = vpack.c.b16 %v134, %v133
    %v146 = vpack.c.b16 %v136, %v135
    %v147 = vpack.c.b16 %v138, %v137
    %v148 = vpack.c.b16 %v140, %v139
    %157 = vmatprep.subr.bf16.mxu0 0
    %158 = vmatpush1.bf16.msra.mxu0 %v141
    %159 = vmatprep.subr.bf16.mxu0 0
    %160 = vmatpush1.bf16.msra.mxu0 %v142
    %161 = vmatprep.subr.bf16.mxu0 0
    %162 = vmatpush1.bf16.msra.mxu0 %v143
    %163 = vmatprep.subr.bf16.mxu0 0
    %164 = vmatpush1.bf16.msra.mxu0 %v144
    %165 = vmatprep.subr.bf16.mxu0 0
    %166 = vmatpush1.bf16.msra.mxu0 %v145
    %167 = vmatprep.subr.bf16.mxu0 0
    %168 = vmatpush1.bf16.msra.mxu0 %v146
    %169 = vmatprep.subr.bf16.mxu0 0
    %170 = vmatpush1.bf16.msra.mxu0 %v147
    %171 = vmatprep.subr.bf16.mxu0 0
    %172 = vmatpush1.bf16.msra.mxu0 %v148
    %173 = vmatprep.subr.bf16.mxu0 0
    %174 = vmatpush1.bf16.msra.mxu0 0
    %175 = vmatprep.subr.bf16.mxu0 0
    %176 = vmatpush1.bf16.msra.mxu0 0
    %177 = vmatprep.subr.bf16.mxu0 0
    %178 = vmatpush1.bf16.msra.mxu0 0
    %179 = vmatprep.subr.bf16.mxu0 0
    %180 = vmatpush1.bf16.msra.mxu0 0
    %181 = vmatprep.subr.bf16.mxu0 0
    %182 = vmatpush1.bf16.msra.mxu0 0
    %183 = vmatprep.subr.bf16.mxu0 0
    %184 = vmatpush1.bf16.msra.mxu0 0
    %185 = vmatprep.subr.bf16.mxu0 0
    %186 = vmatpush1.bf16.msra.mxu0 0
    %187 = vmatprep.subr.bf16.mxu0 0
    %188 = vmatpush1.bf16.msra.mxu0 0
    %189 = vmatprep.mubr.bf16.mxu0 0
    %190 = vmatmul.mubr.bf16.gmra.mrb[0].mxu0 %v101
    %v191 = vpop.f32.mrb[0].mxu0
    %v192 = vadd.f32 %v107, %v191
    %v193 = vpop.f32.mrb[0].mxu0
    %v194 = vpop.f32.mrb[0].mxu0
    %v195 = vpop.f32.mrb[0].mxu0
    %196 = vdwg.mxu0
    %v197 = vmax.f32 %v192, 0.0
    %s198 = scalar_lea.vmem [#allocation2], 64
    %v199 = vld [vmem:[%s198] sm:$0xf]
    %v200 = vld [vmem:[%s198 + $0x4] sm:$0xf]
    %v201 = vld [vmem:[%s198 + $0x8] sm:$0xf]
    %v202 = vld [vmem:[%s198 + $0xc] sm:$0xf]
    %v203 = vld [vmem:[%s198 + $0x10] sm:$0xf]
    %v204 = vld [vmem:[%s198 + $0x14] sm:$0xf]
    %v205 = vld [vmem:[%s198 + $0x18] sm:$0xf]
    %v206 = vld [vmem:[%s198 + $0x1c] sm:$0xf]
    %v207 = vld [vmem:[%s198 + $0x20] sm:$0xf]
    %v208 = vld [vmem:[%s198 + $0x24] sm:$0xf]
    %v209 = vld [vmem:[%s198 + $0x28] sm:$0xf]
    %v210 = vld [vmem:[%s198 + $0x2c] sm:$0xf]
    %v211 = vld [vmem:[%s198 + $0x30] sm:$0xf]
    %v212 = vld [vmem:[%s198 + $0x34] sm:$0xf]
    %v213 = vld [vmem:[%s198 + $0x38] sm:$0xf]
    %v214 = vld [vmem:[%s198 + $0x3c] sm:$0xf]
    %v215 = vpack.c.bf16 %v197, %v197
    %s216 = scalar_lea.vmem %s5, 1
    %v217 = vld [vmem:[%s216] sm:$0x1]
    %v219 = vlaneseq
    %v220 = vshrl.u32 %v219, 7
    %v221 = vsub.s32 0, %v220
    %v222 = vrot.slane %v217, %v221
    %v240 = vunpack.c.l.b16 %v199
    %v241 = vunpack.c.l.b16 %v200
    %v242 = vunpack.c.l.b16 %v201
    %v243 = vunpack.c.l.b16 %v202
    %v244 = vunpack.c.l.b16 %v203
    %v245 = vunpack.c.l.b16 %v204
    %v246 = vunpack.c.l.b16 %v205
    %v247 = vunpack.c.l.b16 %v206
    %v248 = vunpack.c.l.b16 %v207
    %v249 = vunpack.c.l.b16 %v208
    %v250 = vunpack.c.l.b16 %v209
    %v251 = vunpack.c.l.b16 %v210
    %v252 = vunpack.c.l.b16 %v211
    %v253 = vunpack.c.l.b16 %v212
    %v254 = vunpack.c.l.b16 %v213
    %v255 = vunpack.c.l.b16 %v214
    %v256 = vpack.c.b16 %v241, %v240
    %v257 = vpack.c.b16 %v243, %v242
    %v258 = vpack.c.b16 %v245, %v244
    %v259 = vpack.c.b16 %v247, %v246
    %v260 = vpack.c.b16 %v249, %v248
    %v261 = vpack.c.b16 %v251, %v250
    %v262 = vpack.c.b16 %v253, %v252
    %v263 = vpack.c.b16 %v255, %v254
    %272 = vmatprep.subr.bf16.mxu0 0
    %273 = vmatpush1.bf16.msra.mxu0 %v256
    %274 = vmatprep.subr.bf16.mxu0 0
    %275 = vmatpush1.bf16.msra.mxu0 %v257
    %276 = vmatprep.subr.bf16.mxu0 0
    %277 = vmatpush1.bf16.msra.mxu0 %v258
    %278 = vmatprep.subr.bf16.mxu0 0
    %279 = vmatpush1.bf16.msra.mxu0 %v259
    %280 = vmatprep.subr.bf16.mxu0 0
    %281 = vmatpush1.bf16.msra.mxu0 %v260
    %282 = vmatprep.subr.bf16.mxu0 0
    %283 = vmatpush1.bf16.msra.mxu0 %v261
    %284 = vmatprep.subr.bf16.mxu0 0
    %285 = vmatpush1.bf16.msra.mxu0 %v262
    %286 = vmatprep.subr.bf16.mxu0 0
    %287 = vmatpush1.bf16.msra.mxu0 %v263
    %288 = vmatprep.subr.bf16.mxu0 0
    %289 = vmatpush1.bf16.msra.mxu0 0
    %290 = vmatprep.subr.bf16.mxu0 0
    %291 = vmatpush1.bf16.msra.mxu0 0
    %292 = vmatprep.subr.bf16.mxu0 0
    %293 = vmatpush1.bf16.msra.mxu0 0
    %294 = vmatprep.subr.bf16.mxu0 0
    %295 = vmatpush1.bf16.msra.mxu0 0
    %296 = vmatprep.subr.bf16.mxu0 0
    %297 = vmatpush1.bf16.msra.mxu0 0
    %298 = vmatprep.subr.bf16.mxu0 0
    %299 = vmatpush1.bf16.msra.mxu0 0
    %300 = vmatprep.subr.bf16.mxu0 0
    %301 = vmatpush1.bf16.msra.mxu0 0
    %302 = vmatprep.subr.bf16.mxu0 0
    %303 = vmatpush1.bf16.msra.mxu0 0
    %304 = vmatprep.mubr.bf16.mxu0 0
    %305 = vmatmul.mubr.bf16.gmra.mrb[0].mxu0 %v215
    %v306 = vpop.f32.mrb[0].mxu0
    %v307 = vadd.f32 %v222, %v306
    %v308 = vpop.f32.mrb[0].mxu0
    %v309 = vpop.f32.mrb[0].mxu0
    %v310 = vpop.f32.mrb[0].mxu0
    %311 = vdwg.mxu0
    %v312 = vmax.f32 %v307, 0.0
    %s313 = scalar_lea.vmem [#allocation2], 128
    %v314 = vld [vmem:[%s313] sm:$0xf]
    %v315 = vld [vmem:[%s313 + $0x4] sm:$0xf]
    %v316 = vld [vmem:[%s313 + $0x8] sm:$0xf]
    %v317 = vld [vmem:[%s313 + $0xc] sm:$0xf]
    %v318 = vld [vmem:[%s313 + $0x10] sm:$0xf]
    %v319 = vld [vmem:[%s313 + $0x14] sm:$0xf]
    %v320 = vld [vmem:[%s313 + $0x18] sm:$0xf]
    %v321 = vld [vmem:[%s313 + $0x1c] sm:$0xf]
    %v322 = vld [vmem:[%s313 + $0x20] sm:$0xf]
    %v323 = vld [vmem:[%s313 + $0x24] sm:$0xf]
    %v324 = vld [vmem:[%s313 + $0x28] sm:$0xf]
    %v325 = vld [vmem:[%s313 + $0x2c] sm:$0xf]
    %v326 = vld [vmem:[%s313 + $0x30] sm:$0xf]
    %v327 = vld [vmem:[%s313 + $0x34] sm:$0xf]
    %v328 = vld [vmem:[%s313 + $0x38] sm:$0xf]
    %v329 = vld [vmem:[%s313 + $0x3c] sm:$0xf]
    %v330 = vpack.c.bf16 %v312, %v312
    %s331 = scalar_lea.vmem %s5, 2
    %v332 = vld [vmem:[%s331] sm:$0x1]
    %v334 = vlaneseq
    %v335 = vshrl.u32 %v334, 7
    %v336 = vsub.s32 0, %v335
    %v337 = vrot.slane %v332, %v336
    %v355 = vunpack.c.l.b16 %v314
    %v356 = vunpack.c.l.b16 %v315
    %v357 = vunpack.c.l.b16 %v316
    %v358 = vunpack.c.l.b16 %v317
    %v359 = vunpack.c.l.b16 %v318
    %v360 = vunpack.c.l.b16 %v319
    %v361 = vunpack.c.l.b16 %v320
    %v362 = vunpack.c.l.b16 %v321
    %v363 = vunpack.c.l.b16 %v322
    %v364 = vunpack.c.l.b16 %v323
    %v365 = vunpack.c.l.b16 %v324
    %v366 = vunpack.c.l.b16 %v325
    %v367 = vunpack.c.l.b16 %v326
    %v368 = vunpack.c.l.b16 %v327
    %v369 = vunpack.c.l.b16 %v328
    %v370 = vunpack.c.l.b16 %v329
    %v371 = vpack.c.b16 %v356, %v355
    %v372 = vpack.c.b16 %v358, %v357
    %v373 = vpack.c.b16 %v360, %v359
    %v374 = vpack.c.b16 %v362, %v361
    %v375 = vpack.c.b16 %v364, %v363
    %v376 = vpack.c.b16 %v366, %v365
    %v377 = vpack.c.b16 %v368, %v367
    %v378 = vpack.c.b16 %v370, %v369
    %387 = vmatprep.subr.bf16.mxu0 0
    %388 = vmatpush1.bf16.msra.mxu0 %v371
    %389 = vmatprep.subr.bf16.mxu0 0
    %390 = vmatpush1.bf16.msra.mxu0 %v372
    %391 = vmatprep.subr.bf16.mxu0 0
    %392 = vmatpush1.bf16.msra.mxu0 %v373
    %393 = vmatprep.subr.bf16.mxu0 0
    %394 = vmatpush1.bf16.msra.mxu0 %v374
    %395 = vmatprep.subr.bf16.mxu0 0
    %396 = vmatpush1.bf16.msra.mxu0 %v375
    %397 = vmatprep.subr.bf16.mxu0 0
    %398 = vmatpush1.bf16.msra.mxu0 %v376
    %399 = vmatprep.subr.bf16.mxu0 0
    %400 = vmatpush1.bf16.msra.mxu0 %v377
    %401 = vmatprep.subr.bf16.mxu0 0
    %402 = vmatpush1.bf16.msra.mxu0 %v378
    %403 = vmatprep.subr.bf16.mxu0 0
    %404 = vmatpush1.bf16.msra.mxu0 0
    %405 = vmatprep.subr.bf16.mxu0 0
    %406 = vmatpush1.bf16.msra.mxu0 0
    %407 = vmatprep.subr.bf16.mxu0 0
    %408 = vmatpush1.bf16.msra.mxu0 0
    %409 = vmatprep.subr.bf16.mxu0 0
    %410 = vmatpush1.bf16.msra.mxu0 0
    %411 = vmatprep.subr.bf16.mxu0 0
    %412 = vmatpush1.bf16.msra.mxu0 0
    %413 = vmatprep.subr.bf16.mxu0 0
    %414 = vmatpush1.bf16.msra.mxu0 0
    %415 = vmatprep.subr.bf16.mxu0 0
    %416 = vmatpush1.bf16.msra.mxu0 0
    %417 = vmatprep.subr.bf16.mxu0 0
    %418 = vmatpush1.bf16.msra.mxu0 0
    %419 = vmatprep.mubr.bf16.mxu0 0
    %420 = vmatmul.mubr.bf16.gmra.mrb[0].mxu0 %v330
    %v421 = vpop.f32.mrb[0].mxu0
    %v422 = vadd.f32 %v337, %v421
    %v423 = vpop.f32.mrb[0].mxu0
    %v424 = vpop.f32.mrb[0].mxu0
    %v425 = vpop.f32.mrb[0].mxu0
    %426 = vdwg.mxu0
    %427 = vst [vmem:[%s8] sm:$0xff] %v422
    %428 = vrot.lane.b32.xlu0 %v422, 112
    %v429 = vpop.permute.xlu0 %428
    %vm430 = vcmp.lt.s32.totalorder %v64, 16
    %v431 = vld [vmem:[%s3] sm:$0xff]
    %v432 = vmul.f32 %v429, 0.5
    %v433 = vmul.f32 %v432, 1.442695
    %v434 = vpow.pop %v433
    %v435 = vmul.f32 %v431, %v434
    %v436 = vadd.f32 %v435, %v422
    %v437 = vsel %vm430, %v436, 0.0
    %438 = vst [vmem:[#allocation7] sm:$0xff] %v437
    %v439 = vld [vmem:[#allocation5] sm:$0xf]
    %v440 = vld [vmem:[#allocation5 + $0x4] sm:$0xf]
    %v441 = vld [vmem:[#allocation5 + $0x8] sm:$0xf]
    %v442 = vld [vmem:[#allocation5 + $0xc] sm:$0xf]
    %v443 = vld [vmem:[#allocation5 + $0x10] sm:$0xf]
    %v444 = vld [vmem:[#allocation5 + $0x14] sm:$0xf]
    %v445 = vld [vmem:[#allocation5 + $0x18] sm:$0xf]
    %v446 = vld [vmem:[#allocation5 + $0x1c] sm:$0xf]
    %v447 = vld [vmem:[#allocation5 + $0x20] sm:$0xf]
    %v448 = vld [vmem:[#allocation5 + $0x24] sm:$0xf]
    %v449 = vld [vmem:[#allocation5 + $0x28] sm:$0xf]
    %v450 = vld [vmem:[#allocation5 + $0x2c] sm:$0xf]
    %v451 = vld [vmem:[#allocation5 + $0x30] sm:$0xf]
    %v452 = vld [vmem:[#allocation5 + $0x34] sm:$0xf]
    %v453 = vld [vmem:[#allocation5 + $0x38] sm:$0xf]
    %v454 = vld [vmem:[#allocation5 + $0x3c] sm:$0xf]
    %v455 = vld [vmem:[%s1] sm:$0xff]
    %v456 = vadd.s32 %v455, 16
    %457 = vset.pattern.permute.xlu0 0
    %458 = vperm.xlu0 %457, %v456
    %v459 = vpop.permute.xlu0 %458
    %vm460 = vcmp.eq.s32.totalorder %v64, %v459
    %v461 = vsel %vm460, 1, 0
    %v462 = vcvt.s32.f32 %v461
    %v463 = vadd.f32 %v437, %v462
    %v464 = vld [vmem:[%s2] sm:$0xff]
    %v465 = vadd.s32 %v464, 16
    %v466 = vadd.s32 %v465, 8
    %467 = vset.pattern.permute.xlu0 0
    %468 = vperm.xlu0 %467, %v466
    %v469 = vpop.permute.xlu0 %468
    %vm470 = vcmp.eq.s32.totalorder %v64, %v469
    %v471 = vsel %vm470, 1, 0
    %v472 = vcvt.s32.f32 %v471
    %v473 = vadd.f32 %v463, %v472
    %v474 = vpack.c.bf16 %v473, %v473
    %v475 = vld [vmem:[%s7] sm:$0x1]
    %v477 = vlaneseq
    %v478 = vshrl.u32 %v477, 7
    %v479 = vsub.s32 0, %v478
    %v480 = vrot.slane %v475, %v479
    %v498 = vunpack.c.l.b16 %v439
    %v499 = vunpack.c.l.b16 %v440
    %v500 = vunpack.c.l.b16 %v441
    %v501 = vunpack.c.l.b16 %v442
    %v502 = vunpack.c.l.b16 %v443
    %v503 = vunpack.c.l.b16 %v444
    %v504 = vunpack.c.l.b16 %v445
    %v505 = vunpack.c.l.b16 %v446
    %v506 = vunpack.c.l.b16 %v447
    %v507 = vunpack.c.l.b16 %v448
    %v508 = vunpack.c.l.b16 %v449
    %v509 = vunpack.c.l.b16 %v450
    %v510 = vunpack.c.l.b16 %v451
    %v511 = vunpack.c.l.b16 %v452
    %v512 = vunpack.c.l.b16 %v453
    %v513 = vunpack.c.l.b16 %v454
    %v514 = vpack.c.b16 %v499, %v498
    %v515 = vpack.c.b16 %v501, %v500
    %v516 = vpack.c.b16 %v503, %v502
    %v517 = vpack.c.b16 %v505, %v504
    %v518 = vpack.c.b16 %v507, %v506
    %v519 = vpack.c.b16 %v509, %v508
    %v520 = vpack.c.b16 %v511, %v510
    %v521 = vpack.c.b16 %v513, %v512
    %530 = vmatprep.subr.bf16.mxu0 0
    %531 = vmatpush1.bf16.msra.mxu0 %v514
    %532 = vmatprep.subr.bf16.mxu0 0
    %533 = vmatpush1.bf16.msra.mxu0 %v515
    %534 = vmatprep.subr.bf16.mxu0 0
    %535 = vmatpush1.bf16.msra.mxu0 %v516
    %536 = vmatprep.subr.bf16.mxu0 0
    %537 = vmatpush1.bf16.msra.mxu0 %v517
    %538 = vmatprep.subr.bf16.mxu0 0
    %539 = vmatpush1.bf16.msra.mxu0 %v518
    %540 = vmatprep.subr.bf16.mxu0 0
    %541 = vmatpush1.bf16.msra.mxu0 %v519
    %542 = vmatprep.subr.bf16.mxu0 0
    %543 = vmatpush1.bf16.msra.mxu0 %v520
    %544 = vmatprep.subr.bf16.mxu0 0
    %545 = vmatpush1.bf16.msra.mxu0 %v521
    %546 = vmatprep.subr.bf16.mxu0 0
    %547 = vmatpush1.bf16.msra.mxu0 0
    %548 = vmatprep.subr.bf16.mxu0 0
    %549 = vmatpush1.bf16.msra.mxu0 0
    %550 = vmatprep.subr.bf16.mxu0 0
    %551 = vmatpush1.bf16.msra.mxu0 0
    %552 = vmatprep.subr.bf16.mxu0 0
    %553 = vmatpush1.bf16.msra.mxu0 0
    %554 = vmatprep.subr.bf16.mxu0 0
    %555 = vmatpush1.bf16.msra.mxu0 0
    %556 = vmatprep.subr.bf16.mxu0 0
    %557 = vmatpush1.bf16.msra.mxu0 0
    %558 = vmatprep.subr.bf16.mxu0 0
    %559 = vmatpush1.bf16.msra.mxu0 0
    %560 = vmatprep.subr.bf16.mxu0 0
    %561 = vmatpush1.bf16.msra.mxu0 0
    %562 = vmatprep.mubr.bf16.mxu0 0
    %563 = vmatmul.mubr.bf16.gmra.mrb[0].mxu0 %v474
    %v564 = vpop.f32.mrb[0].mxu0
    %v565 = vadd.f32 %v480, %v564
    %v566 = vpop.f32.mrb[0].mxu0
    %v567 = vpop.f32.mrb[0].mxu0
    %v568 = vpop.f32.mrb[0].mxu0
    %569 = vdwg.mxu0
    %v570 = vmax.f32 %v565, 0.0
    %s571 = scalar_lea.vmem [#allocation5], 64
    %v572 = vld [vmem:[%s571] sm:$0xf]
    %v573 = vld [vmem:[%s571 + $0x4] sm:$0xf]
    %v574 = vld [vmem:[%s571 + $0x8] sm:$0xf]
    %v575 = vld [vmem:[%s571 + $0xc] sm:$0xf]
    %v576 = vld [vmem:[%s571 + $0x10] sm:$0xf]
    %v577 = vld [vmem:[%s571 + $0x14] sm:$0xf]
    %v578 = vld [vmem:[%s571 + $0x18] sm:$0xf]
    %v579 = vld [vmem:[%s571 + $0x1c] sm:$0xf]
    %v580 = vld [vmem:[%s571 + $0x20] sm:$0xf]
    %v581 = vld [vmem:[%s571 + $0x24] sm:$0xf]
    %v582 = vld [vmem:[%s571 + $0x28] sm:$0xf]
    %v583 = vld [vmem:[%s571 + $0x2c] sm:$0xf]
    %v584 = vld [vmem:[%s571 + $0x30] sm:$0xf]
    %v585 = vld [vmem:[%s571 + $0x34] sm:$0xf]
    %v586 = vld [vmem:[%s571 + $0x38] sm:$0xf]
    %v587 = vld [vmem:[%s571 + $0x3c] sm:$0xf]
    %v588 = vpack.c.bf16 %v570, %v570
    %s589 = scalar_lea.vmem %s7, 1
    %v590 = vld [vmem:[%s589] sm:$0x1]
    %v592 = vlaneseq
    %v593 = vshrl.u32 %v592, 7
    %v594 = vsub.s32 0, %v593
    %v595 = vrot.slane %v590, %v594
    %v613 = vunpack.c.l.b16 %v572
    %v614 = vunpack.c.l.b16 %v573
    %v615 = vunpack.c.l.b16 %v574
    %v616 = vunpack.c.l.b16 %v575
    %v617 = vunpack.c.l.b16 %v576
    %v618 = vunpack.c.l.b16 %v577
    %v619 = vunpack.c.l.b16 %v578
    %v620 = vunpack.c.l.b16 %v579
    %v621 = vunpack.c.l.b16 %v580
    %v622 = vunpack.c.l.b16 %v581
    %v623 = vunpack.c.l.b16 %v582
    %v624 = vunpack.c.l.b16 %v583
    %v625 = vunpack.c.l.b16 %v584
    %v626 = vunpack.c.l.b16 %v585
    %v627 = vunpack.c.l.b16 %v586
    %v628 = vunpack.c.l.b16 %v587
    %v629 = vpack.c.b16 %v614, %v613
    %v630 = vpack.c.b16 %v616, %v615
    %v631 = vpack.c.b16 %v618, %v617
    %v632 = vpack.c.b16 %v620, %v619
    %v633 = vpack.c.b16 %v622, %v621
    %v634 = vpack.c.b16 %v624, %v623
    %v635 = vpack.c.b16 %v626, %v625
    %v636 = vpack.c.b16 %v628, %v627
    %645 = vmatprep.subr.bf16.mxu0 0
    %646 = vmatpush1.bf16.msra.mxu0 %v629
    %647 = vmatprep.subr.bf16.mxu0 0
    %648 = vmatpush1.bf16.msra.mxu0 %v630
    %649 = vmatprep.subr.bf16.mxu0 0
    %650 = vmatpush1.bf16.msra.mxu0 %v631
    %651 = vmatprep.subr.bf16.mxu0 0
    %652 = vmatpush1.bf16.msra.mxu0 %v632
    %653 = vmatprep.subr.bf16.mxu0 0
    %654 = vmatpush1.bf16.msra.mxu0 %v633
    %655 = vmatprep.subr.bf16.mxu0 0
    %656 = vmatpush1.bf16.msra.mxu0 %v634
    %657 = vmatprep.subr.bf16.mxu0 0
    %658 = vmatpush1.bf16.msra.mxu0 %v635
    %659 = vmatprep.subr.bf16.mxu0 0
    %660 = vmatpush1.bf16.msra.mxu0 %v636
    %661 = vmatprep.subr.bf16.mxu0 0
    %662 = vmatpush1.bf16.msra.mxu0 0
    %663 = vmatprep.subr.bf16.mxu0 0
    %664 = vmatpush1.bf16.msra.mxu0 0
    %665 = vmatprep.subr.bf16.mxu0 0
    %666 = vmatpush1.bf16.msra.mxu0 0
    %667 = vmatprep.subr.bf16.mxu0 0
    %668 = vmatpush1.bf16.msra.mxu0 0
    %669 = vmatprep.subr.bf16.mxu0 0
    %670 = vmatpush1.bf16.msra.mxu0 0
    %671 = vmatprep.subr.bf16.mxu0 0
    %672 = vmatpush1.bf16.msra.mxu0 0
    %673 = vmatprep.subr.bf16.mxu0 0
    %674 = vmatpush1.bf16.msra.mxu0 0
    %675 = vmatprep.subr.bf16.mxu0 0
    %676 = vmatpush1.bf16.msra.mxu0 0
    %677 = vmatprep.mubr.bf16.mxu0 0
    %678 = vmatmul.mubr.bf16.gmra.mrb[0].mxu0 %v588
    %v679 = vpop.f32.mrb[0].mxu0
    %v680 = vadd.f32 %v595, %v679
    %v681 = vpop.f32.mrb[0].mxu0
    %v682 = vpop.f32.mrb[0].mxu0
    %v683 = vpop.f32.mrb[0].mxu0
    %684 = vdwg.mxu0
    %v685 = vmax.f32 %v680, 0.0
    %s686 = scalar_lea.vmem [#allocation5], 128
    %v687 = vld [vmem:[%s686] sm:$0xf]
    %v688 = vld [vmem:[%s686 + $0x4] sm:$0xf]
    %v689 = vld [vmem:[%s686 + $0x8] sm:$0xf]
    %v690 = vld [vmem:[%s686 + $0xc] sm:$0xf]
    %v691 = vld [vmem:[%s686 + $0x10] sm:$0xf]
    %v692 = vld [vmem:[%s686 + $0x14] sm:$0xf]
    %v693 = vld [vmem:[%s686 + $0x18] sm:$0xf]
    %v694 = vld [vmem:[%s686 + $0x1c] sm:$0xf]
    %v695 = vld [vmem:[%s686 + $0x20] sm:$0xf]
    %v696 = vld [vmem:[%s686 + $0x24] sm:$0xf]
    %v697 = vld [vmem:[%s686 + $0x28] sm:$0xf]
    %v698 = vld [vmem:[%s686 + $0x2c] sm:$0xf]
    %v699 = vld [vmem:[%s686 + $0x30] sm:$0xf]
    %v700 = vld [vmem:[%s686 + $0x34] sm:$0xf]
    %v701 = vld [vmem:[%s686 + $0x38] sm:$0xf]
    %v702 = vld [vmem:[%s686 + $0x3c] sm:$0xf]
    %v703 = vpack.c.bf16 %v685, %v685
    %s704 = scalar_lea.vmem %s7, 2
    %v705 = vld [vmem:[%s704] sm:$0x1]
    %v707 = vlaneseq
    %v708 = vshrl.u32 %v707, 7
    %v709 = vsub.s32 0, %v708
    %v710 = vrot.slane %v705, %v709
    %v728 = vunpack.c.l.b16 %v687
    %v729 = vunpack.c.l.b16 %v688
    %v730 = vunpack.c.l.b16 %v689
    %v731 = vunpack.c.l.b16 %v690
    %v732 = vunpack.c.l.b16 %v691
    %v733 = vunpack.c.l.b16 %v692
    %v734 = vunpack.c.l.b16 %v693
    %v735 = vunpack.c.l.b16 %v694
    %v736 = vunpack.c.l.b16 %v695
    %v737 = vunpack.c.l.b16 %v696
    %v738 = vunpack.c.l.b16 %v697
    %v739 = vunpack.c.l.b16 %v698
    %v740 = vunpack.c.l.b16 %v699
    %v741 = vunpack.c.l.b16 %v700
    %v742 = vunpack.c.l.b16 %v701
    %v743 = vunpack.c.l.b16 %v702
    %v744 = vpack.c.b16 %v729, %v728
    %v745 = vpack.c.b16 %v731, %v730
    %v746 = vpack.c.b16 %v733, %v732
    %v747 = vpack.c.b16 %v735, %v734
    %v748 = vpack.c.b16 %v737, %v736
    %v749 = vpack.c.b16 %v739, %v738
    %v750 = vpack.c.b16 %v741, %v740
    %v751 = vpack.c.b16 %v743, %v742
    %760 = vmatprep.subr.bf16.mxu0 0
    %761 = vmatpush1.bf16.msra.mxu0 %v744
    %762 = vmatprep.subr.bf16.mxu0 0
    %763 = vmatpush1.bf16.msra.mxu0 %v745
    %764 = vmatprep.subr.bf16.mxu0 0
    %765 = vmatpush1.bf16.msra.mxu0 %v746
    %766 = vmatprep.subr.bf16.mxu0 0
    %767 = vmatpush1.bf16.msra.mxu0 %v747
    %768 = vmatprep.subr.bf16.mxu0 0
    %769 = vmatpush1.bf16.msra.mxu0 %v748
    %770 = vmatprep.subr.bf16.mxu0 0
    %771 = vmatpush1.bf16.msra.mxu0 %v749
    %772 = vmatprep.subr.bf16.mxu0 0
    %773 = vmatpush1.bf16.msra.mxu0 %v750
    %774 = vmatprep.subr.bf16.mxu0 0
    %775 = vmatpush1.bf16.msra.mxu0 %v751
    %776 = vmatprep.subr.bf16.mxu0 0
    %777 = vmatpush1.bf16.msra.mxu0 0
    %778 = vmatprep.subr.bf16.mxu0 0
    %779 = vmatpush1.bf16.msra.mxu0 0
    %780 = vmatprep.subr.bf16.mxu0 0
    %781 = vmatpush1.bf16.msra.mxu0 0
    %782 = vmatprep.subr.bf16.mxu0 0
    %783 = vmatpush1.bf16.msra.mxu0 0
    %784 = vmatprep.subr.bf16.mxu0 0
    %785 = vmatpush1.bf16.msra.mxu0 0
    %786 = vmatprep.subr.bf16.mxu0 0
    %787 = vmatpush1.bf16.msra.mxu0 0
    %788 = vmatprep.subr.bf16.mxu0 0
    %789 = vmatpush1.bf16.msra.mxu0 0
    %790 = vmatprep.subr.bf16.mxu0 0
    %791 = vmatpush1.bf16.msra.mxu0 0
    %792 = vmatprep.mubr.bf16.mxu0 0
    %793 = vmatmul.mubr.bf16.gmra.mrb[0].mxu0 %v703
    %v794 = vpop.f32.mrb[0].mxu0
    %v795 = vadd.f32 %v710, %v794
    %v796 = vpop.f32.mrb[0].mxu0
    %v797 = vpop.f32.mrb[0].mxu0
    %v798 = vpop.f32.mrb[0].mxu0
    %799 = vdwg.mxu0
    %v800 = vsub.f32 0.0, %v795
    %v801 = vmul.f32 %v800, 1.442695
    %v802 = vpow.pop %v801
    %v803 = vadd.f32 %v802, 1.0
    %v804 = vrcp.pop %v803
    %vm805 = vcmp.lt.s32.totalorder %v64, 32
    %v806 = vsel %vm805, %v804, 0.0
    %v807 = vmul.f32 %v806, %v806
    %808 = vadd.xlane.f32.xlu0 %v807
    %v809 = vpop.xlane.xlu0 %808
    %v810 = vmax.f32 %v809, 1e-24
    %v811 = vrsqrt.pop %v810
    %v812 = vmul.f32 %v806, %v811
    %813 = vst [vmem:[#allocation8] sm:$0xff] %v812
    // Predicated region
    $region42: #{vae2_pallas.1} parent=1 // pred_check
      _
    $region43: #{vae2_pallas.1} parent=1 // pred_check_branch
      %815 = sbr.rel (0) target = $region45
    $region44: #{vae2_pallas.1} parent=1 // pred_region
      _
    $region45: #{vae2_pallas.1} parent=1 // pred_fallthru
      _
    // Predicated region
    $region46: #{vae2_pallas.1} parent=1 // pred_check
      _
    $region47: #{vae2_pallas.1} parent=1 // pred_check_branch
      %817 = sbr.rel (0) target = $region49
    $region48: #{vae2_pallas.1} parent=1 // pred_region
      %s819 = ssub.s32 128, 128
      %820 = vsyncadd [#allocation4], %s819
      %s822 = sshll.u32 [#allocation7], 4
      %s823 = int_to_ptr.vmem [resolvable:$true] %s822
      %825 = dma.vmem_to_hbm [thread:$0]  %s823, 128, %s9, [#allocation4]
    $region49: #{vae2_pallas.1} parent=1 // pred_fallthru
      _
    // Predicated region
    $region50: #{vae2_pallas.1} parent=1 // pred_check
      _
    $region51: #{vae2_pallas.1} parent=1 // pred_check_branch
      %827 = sbr.rel (0) target = $region53
    $region52: #{vae2_pallas.1} parent=1 // pred_region
      %s829 = ssub.s32 128, 128
      %830 = vsyncadd [#allocation9], %s829
      %s832 = sshll.u32 [#allocation8], 4
      %s833 = int_to_ptr.vmem [resolvable:$true] %s832
      %835 = dma.vmem_to_hbm [thread:$0]  %s833, 128, %s10, [#allocation9]
    $region53: #{vae2_pallas.1} parent=1 // pred_fallthru
      _
    // Predicated region
    $region54: #{vae2_pallas.1} parent=1 // pred_check
      _
    $region55: #{vae2_pallas.1} parent=1 // pred_check_branch
      %837 = sbr.rel (0) target = $region57
    $region56: #{vae2_pallas.1} parent=1 // pred_region
      _
    $region57: #{vae2_pallas.1} parent=1 // pred_fallthru
      _
    // Predicated region
    $region58: #{vae2_pallas.1} parent=1 // pred_check
      _
    $region59: #{vae2_pallas.1} parent=1 // pred_check_branch
      %839 = sbr.rel (0) target = $region61
    $region60: #{vae2_pallas.1} parent=1 // pred_region
      %840 = dma.done [#allocation4], 128
    $region61: #{vae2_pallas.1} parent=1 // pred_fallthru
      _
    // Predicated region
    $region62: #{vae2_pallas.1} parent=1 // pred_check
      _
    $region63: #{vae2_pallas.1} parent=1 // pred_check_branch
      %842 = sbr.rel (0) target = $region65
    $region64: #{vae2_pallas.1} parent=1 // pred_region
      %843 = dma.done [#allocation9], 128
    $region65: #{vae2_pallas.1} parent=1 // pred_fallthru
      _
    %844 = vsyncpa [#allocation3], 1
    %845 = vsyncpa [#allocation6], 1
    %846 = vsyncpa [#allocation4], 1
    %847 = vsyncpa [#allocation9], 1

</llo_original>
